<compile_context>
chip_gen: v7x
topology: tpu7x:2x2x1
jax: 0.10.0
libtpu: 0.0.40
codegen_flags: <defaults>
</compile_context>

<pallas_src>
import functools

import jax
import jax.numpy as jnp
import numpy as np
from jax import lax
from jax.experimental import pallas as pl
from jax.experimental.pallas import tpu as pltpu

EPS = 1e-5


def _lane_channel_sum(row, W, Cout):
    """Sum lanes sharing a channel (lane l -> channel l % Cout), broadcast back.

    row: (1, W*Cout) f32 with no padding lanes.  Uses XLU lane rotations only,
    so it costs no MXU time and needs no O(L^2) fold operand.
    """
    L = W * Cout
    if W & (W - 1) == 0:                      # power-of-two W: log2(W) tree
        s = row
        shift = Cout
        while shift < L:
            s = s + pltpu.roll(s, shift=shift, axis=1)
            shift *= 2
        return s
    # generic fallback: W-1 rotations against the original row
    s = row
    for k in range(1, W):
        s = s + pltpu.roll(row, shift=k * Cout, axis=1)
    return s


def _conv_bn_relu_kernel(x_ref, w_ref, gamma_ref, beta_ref, out_ref, *,
                         W, Cout, inv_count):
    """Fused conv(3x3, same, no bias) + BatchNorm2d(train stats) + ReLU.

    x_ref    : (N*H, Kpad)   bf16 row-strip im2col of padded input (zero-padded K)
    w_ref    : (Kpad, W*Cout) bf16 Toeplitz-expanded conv weight
    gamma_ref: (1, W*Cout)   f32 BN scale, tiled to lane width
    beta_ref : (1, W*Cout)   f32 BN shift, tiled to lane width
    out_ref  : (N*H, W*Cout) f32 lane-dense output
    """
    # Convolution: a single bf16 MXU matmul with f32 accumulation; the result
    # is already lane-dense (last dim is a multiple of 128).
    y = jnp.dot(x_ref[...], w_ref[...], preferred_element_type=jnp.float32)

    # BatchNorm2d training-mode (biased) statistics, two-pass, f32.
    # Row-sum is hoisted ahead of the channel reduce (identical by linearity),
    # then lanes of the same channel are summed with XLU rolls.
    row_sum = jnp.sum(y, axis=0, keepdims=True)                      # (1, L)
    mean = _lane_channel_sum(row_sum, W, Cout) * inv_count           # (1, L)
    d = y - mean
    sq_sum = jnp.sum(d * d, axis=0, keepdims=True)                   # (1, L)
    var = _lane_channel_sum(sq_sum, W, Cout) * inv_count             # (1, L)

    scale = lax.rsqrt(var + EPS) * gamma_ref[...]                    # EUP slot

    # ReLU + unmasked full-vreg store.
    out_ref[...] = jnp.maximum(d * scale + beta_ref[...], 0.0)


def _conv2d_block_forward(x_nchw, weight_oihw, gamma, beta):
    """x_nchw: (N, Cin, H, W), weight_oihw: (Cout, Cin, KH, KW) -> (N, Cout, H, W)."""
    N, Cin, H, W = x_nchw.shape
    Cout, _, KH, KW = weight_oihw.shape
    assert KH % 2 == 1 and KW % 2 == 1, "'same' padding path assumes odd kernel"
    assert (W * Cout) % 128 == 0, "lane-dense layout assumes W*Cout % 128 == 0"

    ph, pw = (KH - 1) // 2, (KW - 1) // 2
    Wp = W + 2 * pw
    k_raw = KH * Wp * Cin
    k_pad = ((k_raw + 127) // 128) * 128
    L = W * Cout

    # ---------------- layout plumbing (wrapper-side, vectorized) ----------------
    # NCHW -> NHWC, 'same' zero padding for stride=1, odd kernel.
    x_nhwc = jnp.transpose(x_nchw, (0, 2, 3, 1)).astype(jnp.float32)
    xpad = jnp.pad(x_nhwc, ((0, 0), (ph, ph), (pw, pw), (0, 0)))

    # Row strips: one matmul row per output (n, h); cols ordered (kh, w_in, cin).
    row_idx = np.arange(H)[:, None] + np.arange(KH)[None, :]         # (H, KH) static
    strips = xpad[:, row_idx]                                        # (N, H, KH, Wp, Cin)
    x_rows = strips.reshape(N * H, k_raw)
    x_rows = jnp.pad(x_rows, ((0, 0), (0, k_pad - k_raw))).astype(jnp.bfloat16)

    # Toeplitz-expanded weight via a static selection tensor + one einsum:
    #   wbig[(kh, w_in, cin), (w, c)] = w[kh, w_in - w, cin, c] if 0 <= w_in-w < KW
    w_hwio = jnp.transpose(weight_oihw, (2, 3, 1, 0)).astype(jnp.float32)  # (KH,KW,Cin,Cout)
    sel = (np.arange(Wp)[:, None, None]
           == np.arange(W)[None, :, None] + np.arange(KW)[None, None, :]
           ).astype(np.float32)                                      # (Wp, W, KW) static
    wbig = jnp.einsum('pwk,hkic->hpiwc', jnp.asarray(sel), w_hwio)   # (KH,Wp,Cin,W,Cout)
    wbig = wbig.reshape(k_raw, L)
    wbig = jnp.pad(wbig, ((0, k_pad - k_raw), (0, 0))).astype(jnp.bfloat16)

    # BN affine params tiled to lane width: lane l = w*Cout + c -> param[c].
    gamma_t = jnp.tile(gamma.reshape(1, Cout).astype(jnp.float32), (1, W))
    beta_t = jnp.tile(beta.reshape(1, Cout).astype(jnp.float32), (1, W))

    kernel = functools.partial(_conv_bn_relu_kernel, W=W, Cout=Cout,
                               inv_count=1.0 / float(N * H * W))

    # Single grid-less invocation; everything fits comfortably in VMEM.
    out2d = pl.pallas_call(
        kernel,
        out_shape=jax.ShapeDtypeStruct((N * H, L), jnp.float32),
        in_specs=[pl.BlockSpec(memory_space=pltpu.MemorySpace.VMEM)] * 4,
        out_specs=pl.BlockSpec(memory_space=pltpu.MemorySpace.VMEM),
    )(x_rows, wbig, gamma_t, beta_t)

    # (N*H, W*Cout) -> NHWC -> NCHW to match the PyTorch output convention.
    out_nhwc = out2d.reshape(N, H, W, Cout)
    return jnp.transpose(out_nhwc, (0, 3, 1, 2))


conv2d_block_forward = jax.jit(_conv2d_block_forward)


def reference_forward(x_nchw, weight_oihw, gamma, beta):
    """Pure-JAX f32 reference (lax.conv + train-mode BN + ReLU) for verification."""
    x_nhwc = jnp.transpose(x_nchw, (0, 2, 3, 1)).astype(jnp.float32)
    w_hwio = jnp.transpose(weight_oihw, (2, 3, 1, 0)).astype(jnp.float32)
    y = lax.conv_general_dilated(
        x_nhwc, w_hwio, window_strides=(1, 1), padding="SAME",
        dimension_numbers=("NHWC", "HWIO", "NHWC"))
    mean = jnp.mean(y, axis=(0, 1, 2), keepdims=True)
    var = jnp.mean((y - mean) ** 2, axis=(0, 1, 2), keepdims=True)
    y = (y - mean) * lax.rsqrt(var + EPS) * gamma.reshape(1, 1, 1, -1) + beta.reshape(1, 1, 1, -1)
    y = jnp.maximum(y, 0.0)
    return jnp.transpose(y, (0, 3, 1, 2))


if __name__ == "__main__":
    # Small shapes consistent with the module: batch=2, in_channels=4,
    # out_channels=8, spatial=16x16, kernel_size=3, activation='relu'.
    N, Cin, H, W = 2, 4, 16, 16
    Cout, K = 8, 3

    key = jax.random.PRNGKey(0)
    kx, kw = jax.random.split(key)

    x = jax.random.normal(kx, (N, Cin, H, W), dtype=jnp.float32)

    # Deterministic conv weight init (Kaiming-uniform-like bound, fixed seed).
    fan_in = Cin * K * K
    bound = 1.0 / np.sqrt(fan_in)
    weight = jax.random.uniform(kw, (Cout, Cin, K, K), dtype=jnp.float32,
                                minval=-bound, maxval=bound)

    # BatchNorm2d default affine init: gamma=1, beta=0.
    gamma = jnp.ones((Cout,), dtype=jnp.float32)
    beta = jnp.zeros((Cout,), dtype=jnp.float32)

    out = jax.block_until_ready(conv2d_block_forward(x, weight, gamma, beta))
    ref = jax.block_until_ready(reference_forward(x, weight, gamma, beta))

    # bf16 conv operands (f32 accumulation, f32 BN) vs. the pure-f32 reference:
    # tolerance loosened accordingly.
    np.testing.assert_allclose(np.asarray(out), np.asarray(ref), rtol=2e-2, atol=2e-2)

    print("KERNEL_OK")
</pallas_src>

<mosaic_0001>
module attributes {stable_mosaic.version = 11 : i64} {
  func.func @_conv_bn_relu_kernel(%arg0: memref<32x256xbf16, #tpu.memory_space<vmem>>, %arg1: memref<256x128xbf16, #tpu.memory_space<vmem>>, %arg2: memref<1x128xf32, #tpu.memory_space<vmem>>, %arg3: memref<1x128xf32, #tpu.memory_space<vmem>>, %arg4: memref<32x128xf32, #tpu.memory_space<vmem>>) attributes {dimension_semantics = [], scalar_prefetch = 0 : i64, scratch_operands = 0 : i64, tpu.core_type = #tpu.core_type<tc>} {
    %c0 = arith.constant 0 : index
    %c0_0 = arith.constant 0 : index
    %0 = vector.load %arg0[%c0, %c0_0] : memref<32x256xbf16, #tpu.memory_space<vmem>>, vector<32x256xbf16>
    %c0_1 = arith.constant 0 : index
    %c0_2 = arith.constant 0 : index
    %1 = vector.load %arg1[%c0_1, %c0_2] : memref<256x128xbf16, #tpu.memory_space<vmem>>, vector<256x128xbf16>
    %cst = arith.constant dense<0.000000e+00> : vector<32x128xf32>
    %2 = tpu.matmul %0, %1, %cst {dimension_numbers = #tpu.dot_dimension_numbers<[1], [0], [0], [1], [0, 0, 1, 1], [], []>} : vector<32x256xbf16>, vector<256x128xbf16>, vector<32x128xf32> -> vector<32x128xf32>
    %cst_3 = arith.constant dense<0.000000e+00> : vector<128xf32>
    %3 = vector.multi_reduction <add>, %2, %cst_3 [0] : vector<32x128xf32> to vector<128xf32>
    %4 = vector.shape_cast %3 : vector<128xf32> to vector<1x128xf32>
    %c8_i32 = arith.constant 8 : i32
    %5 = tpu.dynamic_rotate %4 by %c8_i32 dim 1 : vector<1x128xf32>, i32 -> vector<1x128xf32>
    %6 = arith.addf %4, %5 : vector<1x128xf32>
    %c16_i32 = arith.constant 16 : i32
    %7 = tpu.dynamic_rotate %6 by %c16_i32 dim 1 : vector<1x128xf32>, i32 -> vector<1x128xf32>
    %8 = arith.addf %6, %7 : vector<1x128xf32>
    %c32_i32 = arith.constant 32 : i32
    %9 = tpu.dynamic_rotate %8 by %c32_i32 dim 1 : vector<1x128xf32>, i32 -> vector<1x128xf32>
    %10 = arith.addf %8, %9 : vector<1x128xf32>
    %c64_i32 = arith.constant 64 : i32
    %11 = tpu.dynamic_rotate %10 by %c64_i32 dim 1 : vector<1x128xf32>, i32 -> vector<1x128xf32>
    %12 = arith.addf %10, %11 : vector<1x128xf32>
    %cst_4 = arith.constant 0.001953125 : f32
    %13 = vector.broadcast %cst_4 : f32 to vector<1x128xf32>
    %14 = arith.mulf %12, %13 : vector<1x128xf32>
    %15 = vector.broadcast %14 : vector<1x128xf32> to vector<32x128xf32>
    %16 = arith.subf %2, %15 : vector<32x128xf32>
    %17 = arith.mulf %16, %16 : vector<32x128xf32>
    %cst_5 = arith.constant dense<0.000000e+00> : vector<128xf32>
    %18 = vector.multi_reduction <add>, %17, %cst_5 [0] : vector<32x128xf32> to vector<128xf32>
    %19 = vector.shape_cast %18 : vector<128xf32> to vector<1x128xf32>
    %c8_i32_6 = arith.constant 8 : i32
    %20 = tpu.dynamic_rotate %19 by %c8_i32_6 dim 1 : vector<1x128xf32>, i32 -> vector<1x128xf32>
    %21 = arith.addf %19, %20 : vector<1x128xf32>
    %c16_i32_7 = arith.constant 16 : i32
    %22 = tpu.dynamic_rotate %21 by %c16_i32_7 dim 1 : vector<1x128xf32>, i32 -> vector<1x128xf32>
    %23 = arith.addf %21, %22 : vector<1x128xf32>
    %c32_i32_8 = arith.constant 32 : i32
    %24 = tpu.dynamic_rotate %23 by %c32_i32_8 dim 1 : vector<1x128xf32>, i32 -> vector<1x128xf32>
    %25 = arith.addf %23, %24 : vector<1x128xf32>
    %c64_i32_9 = arith.constant 64 : i32
    %26 = tpu.dynamic_rotate %25 by %c64_i32_9 dim 1 : vector<1x128xf32>, i32 -> vector<1x128xf32>
    %27 = arith.addf %25, %26 : vector<1x128xf32>
    %cst_10 = arith.constant 0.001953125 : f32
    %28 = vector.broadcast %cst_10 : f32 to vector<1x128xf32>
    %29 = arith.mulf %27, %28 : vector<1x128xf32>
    %cst_11 = arith.constant 9.99999974E-6 : f32
    %30 = vector.broadcast %cst_11 : f32 to vector<1x128xf32>
    %31 = arith.addf %29, %30 : vector<1x128xf32>
    %32 = math.rsqrt %31 : vector<1x128xf32>
    %c0_12 = arith.constant 0 : index
    %c0_13 = arith.constant 0 : index
    %33 = vector.load %arg2[%c0_12, %c0_13] : memref<1x128xf32, #tpu.memory_space<vmem>>, vector<1x128xf32>
    %34 = arith.mulf %32, %33 : vector<1x128xf32>
    %35 = vector.broadcast %34 : vector<1x128xf32> to vector<32x128xf32>
    %36 = arith.mulf %16, %35 : vector<32x128xf32>
    %c0_14 = arith.constant 0 : index
    %c0_15 = arith.constant 0 : index
    %37 = vector.load %arg3[%c0_14, %c0_15] : memref<1x128xf32, #tpu.memory_space<vmem>>, vector<1x128xf32>
    %38 = vector.broadcast %37 : vector<1x128xf32> to vector<32x128xf32>
    %39 = arith.addf %36, %38 : vector<32x128xf32>
    %cst_16 = arith.constant 0.000000e+00 : f32
    %40 = vector.broadcast %cst_16 : f32 to vector<32x128xf32>
    %41 = arith.maximumf %39, %40 : vector<32x128xf32>
    %c0_17 = arith.constant 0 : index
    %c0_18 = arith.constant 0 : index
    %42 = vector.load %arg4[%c0_17, %c0_18] : memref<32x128xf32, #tpu.memory_space<vmem>>, vector<32x128xf32>
    tpu.vector_store %arg4[%c0_17, %c0_18], %41 {strides = array<i32>} : memref<32x128xf32, #tpu.memory_space<vmem>>, vector<32x128xf32>,
    return
  }
}

</mosaic_0001>

<llo_original>
// kernel: _conv2d_block_forward.1
$region0: #{_conv2d_block_forward.1}
  #allocation0 [shape = 'u32[]', space=smem, size = 0x4, offset = 0x4, fixed_abs, tag = 'smem constant byte address 0x4 - core index']
  #allocation1 [shape = 'u32[144,128]{1,0:T(1,128)}', space=vmem, size = 0x12000, scoped, tag = 'internal scratch']
  %s0 = inlined_call_operand.vmem [shape: bf16[32,256], index: 0, kind: input, shape index: {}]
  %s1 = inlined_call_operand.vmem [shape: bf16[256,128], index: 1, kind: input, shape index: {}]
  %s2 = inlined_call_operand.vmem [shape: f32[1,128], index: 2, kind: input, shape index: {}]
  %s3 = inlined_call_operand.vmem [shape: f32[1,128], index: 3, kind: input, shape index: {}]
  %s4 = inlined_call_operand.vmem [shape: f32[32,128], index: 4, kind: output, shape index: {}]
  %s5 = sld [smem:[#allocation0]]
  $region26: #{_conv2d_block_forward.1} parent=0
    _
  %s7 = ssub.s32 1, %s5
  %s8 = scalar_select 0, %s7, %s5
  // Predicated region
  $region2: #{_conv2d_block_forward.1} parent=0 // pred_check
    _
  $region3: #{_conv2d_block_forward.1} parent=0 // pred_check_branch
    %10 = sbr.rel (0) target = $region5
  $region4: #{_conv2d_block_forward.1} parent=0 // pred_region
    _
  $region5: #{_conv2d_block_forward.1} parent=0 // pred_fallthru
    _
  // Predicated region
  $region6: #{_conv2d_block_forward.1} parent=0 // pred_check
    _
  $region7: #{_conv2d_block_forward.1} parent=0 // pred_check_branch
    %12 = sbr.rel (0) target = $region9
  $region8: #{_conv2d_block_forward.1} parent=0 // pred_region
    _
  $region9: #{_conv2d_block_forward.1} parent=0 // pred_fallthru
    _
  // Predicated region
  $region10: #{_conv2d_block_forward.1} parent=0 // pred_check
    _
  $region11: #{_conv2d_block_forward.1} parent=0 // pred_check_branch
    %14 = sbr.rel (0) target = $region13
  $region12: #{_conv2d_block_forward.1} parent=0 // pred_region
    _
  $region13: #{_conv2d_block_forward.1} parent=0 // pred_fallthru
    _
  // Predicated region
  $region14: #{_conv2d_block_forward.1} parent=0 // pred_check
    _
  $region15: #{_conv2d_block_forward.1} parent=0 // pred_check_branch
    %16 = sbr.rel (0) target = $region17
  $region16: #{_conv2d_block_forward.1} parent=0 // pred_region
    _
  $region17: #{_conv2d_block_forward.1} parent=0 // pred_fallthru
    _
  %v18 = vld [vmem:[%s0] sm:$0xff]
  %v19 = vld [vmem:[%s0 + $0x8] sm:$0xff]
  %v20 = vld [vmem:[%s0 + $0x10] sm:$0xff]
  %v21 = vld [vmem:[%s0 + $0x18] sm:$0xff]
  %v22 = vld [vmem:[%s1] sm:$0xf]
  %v23 = vld [vmem:[%s1 + $0x4] sm:$0xf]
  %v24 = vld [vmem:[%s1 + $0x8] sm:$0xf]
  %v25 = vld [vmem:[%s1 + $0xc] sm:$0xf]
  %v26 = vld [vmem:[%s1 + $0x10] sm:$0xf]
  %v27 = vld [vmem:[%s1 + $0x14] sm:$0xf]
  %v28 = vld [vmem:[%s1 + $0x18] sm:$0xf]
  %v29 = vld [vmem:[%s1 + $0x1c] sm:$0xf]
  %v30 = vld [vmem:[%s1 + $0x20] sm:$0xf]
  %v31 = vld [vmem:[%s1 + $0x24] sm:$0xf]
  %v32 = vld [vmem:[%s1 + $0x28] sm:$0xf]
  %v33 = vld [vmem:[%s1 + $0x2c] sm:$0xf]
  %v34 = vld [vmem:[%s1 + $0x30] sm:$0xf]
  %v35 = vld [vmem:[%s1 + $0x34] sm:$0xf]
  %v36 = vld [vmem:[%s1 + $0x38] sm:$0xf]
  %v37 = vld [vmem:[%s1 + $0x3c] sm:$0xf]
  %v38 = vld [vmem:[%s1 + $0x40] sm:$0xf]
  %v39 = vld [vmem:[%s1 + $0x44] sm:$0xf]
  %v40 = vld [vmem:[%s1 + $0x48] sm:$0xf]
  %v41 = vld [vmem:[%s1 + $0x4c] sm:$0xf]
  %v42 = vld [vmem:[%s1 + $0x50] sm:$0xf]
  %v43 = vld [vmem:[%s1 + $0x54] sm:$0xf]
  %v44 = vld [vmem:[%s1 + $0x58] sm:$0xf]
  %v45 = vld [vmem:[%s1 + $0x5c] sm:$0xf]
  %v46 = vld [vmem:[%s1 + $0x60] sm:$0xf]
  %v47 = vld [vmem:[%s1 + $0x64] sm:$0xf]
  %v48 = vld [vmem:[%s1 + $0x68] sm:$0xf]
  %v49 = vld [vmem:[%s1 + $0x6c] sm:$0xf]
  %v50 = vld [vmem:[%s1 + $0x70] sm:$0xf]
  %v51 = vld [vmem:[%s1 + $0x74] sm:$0xf]
  %v52 = vld [vmem:[%s1 + $0x78] sm:$0xf]
  %v53 = vld [vmem:[%s1 + $0x7c] sm:$0xf]
  %v58 = vunpack.c.l.b16 %v18
  %v59 = vunpack.c.h.b16 %v18
  %v60 = vunpack.c.l.b16 %v19
  %v61 = vunpack.c.h.b16 %v19
  %v62 = vunpack.c.l.b16 %v20
  %v63 = vunpack.c.h.b16 %v20
  %v64 = vunpack.c.l.b16 %v21
  %v65 = vunpack.c.h.b16 %v21
  %v66 = vpack.c.b16 %v60, %v58
  %v67 = vpack.c.b16 %v61, %v59
  %v68 = vpack.c.b16 %v64, %v62
  %v69 = vpack.c.b16 %v65, %v63
  %v106 = vunpack.c.l.b16 %v22
  %v107 = vunpack.c.l.b16 %v23
  %v108 = vunpack.c.l.b16 %v24
  %v109 = vunpack.c.l.b16 %v25
  %v110 = vunpack.c.l.b16 %v26
  %v111 = vunpack.c.l.b16 %v27
  %v112 = vunpack.c.l.b16 %v28
  %v113 = vunpack.c.l.b16 %v29
  %v114 = vunpack.c.l.b16 %v30
  %v115 = vunpack.c.l.b16 %v31
  %v116 = vunpack.c.l.b16 %v32
  %v117 = vunpack.c.l.b16 %v33
  %v118 = vunpack.c.l.b16 %v34
  %v119 = vunpack.c.l.b16 %v35
  %v120 = vunpack.c.l.b16 %v36
  %v121 = vunpack.c.l.b16 %v37
  %v122 = vunpack.c.l.b16 %v38
  %v123 = vunpack.c.l.b16 %v39
  %v124 = vunpack.c.l.b16 %v40
  %v125 = vunpack.c.l.b16 %v41
  %v126 = vunpack.c.l.b16 %v42
  %v127 = vunpack.c.l.b16 %v43
  %v128 = vunpack.c.l.b16 %v44
  %v129 = vunpack.c.l.b16 %v45
  %v130 = vunpack.c.l.b16 %v46
  %v131 = vunpack.c.l.b16 %v47
  %v132 = vunpack.c.l.b16 %v48
  %v133 = vunpack.c.l.b16 %v49
  %v134 = vunpack.c.l.b16 %v50
  %v135 = vunpack.c.l.b16 %v51
  %v136 = vunpack.c.l.b16 %v52
  %v137 = vunpack.c.l.b16 %v53
  %v138 = vpack.c.b16 %v107, %v106
  %v139 = vpack.c.b16 %v109, %v108
  %v140 = vpack.c.b16 %v111, %v110
  %v141 = vpack.c.b16 %v113, %v112
  %v142 = vpack.c.b16 %v115, %v114
  %v143 = vpack.c.b16 %v117, %v116
  %v144 = vpack.c.b16 %v119, %v118
  %v145 = vpack.c.b16 %v121, %v120
  %v146 = vpack.c.b16 %v123, %v122
  %v147 = vpack.c.b16 %v125, %v124
  %v148 = vpack.c.b16 %v127, %v126
  %v149 = vpack.c.b16 %v129, %v128
  %v150 = vpack.c.b16 %v131, %v130
  %v151 = vpack.c.b16 %v133, %v132
  %v152 = vpack.c.b16 %v135, %v134
  %v153 = vpack.c.b16 %v137, %v136
  %170 = vmatprep.subr.bf16.mxu0 0
  %171 = vmatpush1.bf16.msra.mxu0 %v138
  %172 = vmatprep.subr.bf16.mxu0 0
  %173 = vmatpush1.bf16.msra.mxu0 %v139
  %174 = vmatprep.subr.bf16.mxu0 0
  %175 = vmatpush1.bf16.msra.mxu0 %v140
  %176 = vmatprep.subr.bf16.mxu0 0
  %177 = vmatpush1.bf16.msra.mxu0 %v141
  %178 = vmatprep.subr.bf16.mxu0 0
  %179 = vmatpush1.bf16.msra.mxu0 %v142
  %180 = vmatprep.subr.bf16.mxu0 0
  %181 = vmatpush1.bf16.msra.mxu0 %v143
  %182 = vmatprep.subr.bf16.mxu0 0
  %183 = vmatpush1.bf16.msra.mxu0 %v144
  %184 = vmatprep.subr.bf16.mxu0 0
  %185 = vmatpush1.bf16.msra.mxu0 %v145
  %186 = vmatprep.subr.bf16.mxu0 0
  %187 = vmatpush1.bf16.msra.mxu0 %v146
  %188 = vmatprep.subr.bf16.mxu0 0
  %189 = vmatpush1.bf16.msra.mxu0 %v147
  %190 = vmatprep.subr.bf16.mxu0 0
  %191 = vmatpush1.bf16.msra.mxu0 %v148
  %192 = vmatprep.subr.bf16.mxu0 0
  %193 = vmatpush1.bf16.msra.mxu0 %v149
  %194 = vmatprep.subr.bf16.mxu0 0
  %195 = vmatpush1.bf16.msra.mxu0 %v150
  %196 = vmatprep.subr.bf16.mxu0 0
  %197 = vmatpush1.bf16.msra.mxu0 %v151
  %198 = vmatprep.subr.bf16.mxu0 0
  %199 = vmatpush1.bf16.msra.mxu0 %v152
  %200 = vmatprep.subr.bf16.mxu0 0
  %201 = vmatpush1.bf16.msra.mxu0 %v153
  %202 = vmatprep.mubr.bf16.mxu0 %v67
  %203 = vmatmul.mubr.bf16.gmra.mrb[0].mxu0 %v66
  %v204 = vpop.f32.mrb[0].mxu0
  %v205 = vadd.f32 0.0, %v204
  %v206 = vpop.f32.mrb[0].mxu0
  %v207 = vpop.f32.mrb[0].mxu0
  %v208 = vadd.f32 0.0, %v207
  %v209 = vpop.f32.mrb[0].mxu0
  %210 = vmatprep.mubr.bf16.mxu0 %v69
  %211 = vmatmul.mubr.bf16.gmra.mrb[0].mxu0 %v68
  %v212 = vpop.f32.mrb[0].mxu0
  %v213 = vadd.f32 0.0, %v212
  %v214 = vpop.f32.mrb[0].mxu0
  %v215 = vpop.f32.mrb[0].mxu0
  %v216 = vadd.f32 0.0, %v215
  %v217 = vpop.f32.mrb[0].mxu0
  %218 = vdwg.mxu0
  %v219 = vadd.f32 %v205, %v208
  %v220 = vadd.f32 %v219, %v213
  %v221 = vadd.f32 %v220, %v216
  %v222 = vrot.slane %v221, 4
  %v223 = vadd.f32 %v221, %v222
  %v224 = vrot.slane %v223, 2
  %v225 = vadd.f32 %v223, %v224
  %v226 = vrot.slane %v225, 1
  %v227 = vadd.f32 %v225, %v226
  %228 = vrot.lane.b32.xlu0 %v227, 8
  %v229 = vpop.permute.xlu0 %228
  %v230 = vadd.f32 %v227, %v229
  %231 = vrot.lane.b32.xlu0 %v230, 16
  %v232 = vpop.permute.xlu0 %231
  %v233 = vadd.f32 %v230, %v232
  %234 = vrot.lane.b32.xlu0 %v233, 32
  %v235 = vpop.permute.xlu0 %234
  %v236 = vadd.f32 %v233, %v235
  %237 = vrot.lane.b32.xlu0 %v236, 64
  %v238 = vpop.permute.xlu0 %237
  %v239 = vadd.f32 %v236, %v238
  %v240 = vmul.f32 %v239, 0.001953125
  %v241 = vlaneseq
  %v242 = vshrl.u32 %v241, 7
  %v243 = vsub.s32 0, %v242
  %v244 = vrot.slane %v240, %v243
  %v245 = vsub.f32 %v205, %v244
  %v246 = vsub.f32 %v208, %v244
  %v247 = vsub.f32 %v213, %v244
  %v248 = vsub.f32 %v216, %v244
  %v249 = vmul.f32 %v245, %v245
  %v250 = vmul.f32 %v246, %v246
  %v251 = vmul.f32 %v247, %v247
  %v252 = vmul.f32 %v248, %v248
  %v253 = vadd.f32 %v249, %v250
  %v254 = vadd.f32 %v253, %v251
  %v255 = vadd.f32 %v254, %v252
  %v256 = vrot.slane %v255, 4
  %v257 = vadd.f32 %v255, %v256
  %v258 = vrot.slane %v257, 2
  %v259 = vadd.f32 %v257, %v258
  %v260 = vrot.slane %v259, 1
  %v261 = vadd.f32 %v259, %v260
  %262 = vrot.lane.b32.xlu0 %v261, 8
  %v263 = vpop.permute.xlu0 %262
  %v264 = vadd.f32 %v261, %v263
  %265 = vrot.lane.b32.xlu0 %v264, 16
  %v266 = vpop.permute.xlu0 %265
  %v267 = vadd.f32 %v264, %v266
  %268 = vrot.lane.b32.xlu0 %v267, 32
  %v269 = vpop.permute.xlu0 %268
  %v270 = vadd.f32 %v267, %v269
  %271 = vrot.lane.b32.xlu0 %v270, 64
  %v272 = vpop.permute.xlu0 %271
  %v273 = vadd.f32 %v270, %v272
  %v274 = vmul.f32 %v273, 0.001953125
  %v275 = vadd.f32 %v274, 1e-05
  %v276 = vrsqrt.pop %v275
  %v277 = vld [vmem:[%s2] sm:$0x1]
  %v278 = vmul.f32 %v276, %v277
  %v279 = vlaneseq
  %v280 = vshrl.u32 %v279, 7
  %v281 = vsub.s32 0, %v280
  %v282 = vrot.slane %v278, %v281
  %v283 = vmul.f32 %v245, %v282
  %v284 = vmul.f32 %v246, %v282
  %v285 = vmul.f32 %v247, %v282
  %v286 = vmul.f32 %v248, %v282
  %v287 = vld [vmem:[%s3] sm:$0x1]
  %v289 = vlaneseq
  %v290 = vshrl.u32 %v289, 7
  %v291 = vsub.s32 0, %v290
  %v292 = vrot.slane %v287, %v291
  %v294 = vadd.f32 %v283, %v292
  %v295 = vadd.f32 %v284, %v292
  %v296 = vadd.f32 %v285, %v292
  %v297 = vadd.f32 %v286, %v292
  %v298 = vmax.f32 %v294, 0.0
  %v299 = vmax.f32 %v295, 0.0
  %v300 = vmax.f32 %v296, 0.0
  %v301 = vmax.f32 %v297, 0.0
  %302 = vst [vmem:[%s4] sm:$0xff] %v298
  %303 = vst [vmem:[%s4 + $0x8] sm:$0xff] %v299
  %304 = vst [vmem:[%s4 + $0x10] sm:$0xff] %v300
  %305 = vst [vmem:[%s4 + $0x18] sm:$0xff] %v301
  // Predicated region
  $region18: #{_conv2d_block_forward.1} parent=0 // pred_check
    _
  $region19: #{_conv2d_block_forward.1} parent=0 // pred_check_branch
    %307 = sbr.rel (0) target = $region21
  $region20: #{_conv2d_block_forward.1} parent=0 // pred_region
    _
  $region21: #{_conv2d_block_forward.1} parent=0 // pred_fallthru
    _
  // Predicated region
  $region22: #{_conv2d_block_forward.1} parent=0 // pred_check
    _
  $region23: #{_conv2d_block_forward.1} parent=0 // pred_check_branch
    %309 = sbr.rel (0) target = $region25
  $region24: #{_conv2d_block_forward.1} parent=0 // pred_region
    _
  $region25: #{_conv2d_block_forward.1} parent=0 // pred_fallthru
    _

</llo_original>
